<compile_context>
chip_gen: v7x
topology: tpu7x:2x2x1
jax: 0.10.0
libtpu: 0.0.40
codegen_flags: <defaults>
</compile_context>

<pallas_src>
import jax
import jax.numpy as jnp
from jax.experimental import pallas as pl
from jax.experimental.pallas import tpu as pltpu


def _make_vote_kernel(n_layers):
    """Kernel body for `n_layers` shared-MLP (1x1 conv) layers, NCW layout."""

    def kernel(*refs):
        # refs layout:
        #   [0] feat_ref (1, C_in, TN)
        #   per MLP layer i: w_i (C_out_i, C_in_i) bf16 (BN scale folded),
        #                    b_i (C_out_i, 1)      f32  (folded BN bias)
        #   reg_w (3, C_last) bf16, reg_b (3, 1) f32, lo (3, 1) f32 (= min_offset)
        #   outputs: feat_out (1, C_last, TN) bf16,
        #            lim_out  (1, 3, TN) f32 (clamped offsets),
        #            off_out  (1, 3, TN) f32 (raw offsets)
        feat_ref = refs[0]
        idx = 1

        h = feat_ref[0].astype(jnp.bfloat16)                      # (C_in, TN)
        for _ in range(n_layers):
            w = refs[idx][...]                                    # (C_out, C_in) bf16
            b = refs[idx + 1][...]                                # (C_out, 1)    f32
            idx += 2
            acc = jnp.dot(w, h, preferred_element_type=jnp.float32)   # MXU, (C_out, TN)
            h = jnp.maximum(acc + b, 0.0).astype(jnp.bfloat16)    # folded BN bias + ReLU

        reg_w = refs[idx][...]                                    # (3, C_last) bf16
        reg_b = refs[idx + 1][...]                                # (3, 1) f32
        lo = refs[idx + 2][...]                                   # (3, 1) f32  min_offset
        feat_out, lim_out, off_out = refs[idx + 3], refs[idx + 4], refs[idx + 5]

        # ctr_reg: 1x1 conv with bias -> per-point 3-vector offsets (3, TN).
        off = jnp.dot(reg_w, h, preferred_element_type=jnp.float32) + reg_b

        # Faithful to the PyTorch module:
        #   where(off < min_off, min_off, off); then where(. > -min_off, -min_off, .)
        hi = -lo
        limited = jnp.where(off < lo, lo, off)
        limited = jnp.where(limited > hi, hi, limited)

        feat_out[0] = h                                           # bf16 store
        lim_out[0] = limited.astype(lim_out.dtype)
        off_out[0] = off.astype(off_out.dtype)

    return kernel


def _choose_point_tile(N, B, C_in, mlp_list, in_itemsize, point_tile):
    """Pick a lane tile TN (multiple of 128), adaptive to channels / VMEM."""
    n_ceil = pl.cdiv(N, 128) * 128
    if point_tile is None:
        c_last = mlp_list[-1]
        c_max = max([C_in] + list(mlp_list) + [3])
        # Bytes per point held live in VMEM: double-buffered IO blocks plus
        # internal f32 accumulator + bf16 activation scratch.
        per_point = 2 * (C_in * in_itemsize + c_last * 2 + 6 * 4) + c_max * 6
        budget = 24 << 20                      # headroom inside v7x's 64 MiB VMEM
        tn = budget // max(per_point, 1)
        tn = max(512, min(1024, (tn // 128) * 128))
    else:
        tn = max(128, (point_tile // 128) * 128)
    tn = min(tn, n_ceil)
    # v7x megacore: keep at least 2 grid steps across the parallel axes.
    while B * pl.cdiv(n_ceil, tn) < 2 and tn > 128:
        tn -= 128
    Np = pl.cdiv(N, tn) * tn
    return tn, Np


def vote_layer_3dssd_forward(xyz, features, params, *, point_tile=None):
    """Forward pass of Vote_layer3DSSD.

    Args:
      xyz:      (B, N, 3) float32
      features: (B, C_in, N) float32 or bfloat16 (PyTorch NCW layout)
      params: dict from init_params:
        'mlp_w':  list of (C_out_i, C_in_i) conv weights with BN scale folded in
        'mlp_b':  list of (C_out_i, 1) folded BN biases
        'reg_w':  (3, C_last)  ctr_reg weight
        'reg_b':  (3, 1)       ctr_reg bias
        'min_off':(3, 1)       max_translate_range tensor

    Returns:
      (new_xyz (B, N, 3) f32, new_features (B, C_last, N) bf16,
       ctr_offsets (B, N, 3) f32)
    """
    B, C_in, N = features.shape
    mlp_w, mlp_b = params["mlp_w"], params["mlp_b"]
    reg_w, reg_b, min_off = params["reg_w"], params["reg_b"], params["min_off"]
    n_layers = len(mlp_w)
    assert n_layers >= 1, "expected at least one shared-MLP layer"
    c_last = mlp_w[-1].shape[0]
    mlp_list = [w.shape[0] for w in mlp_w]

    TN, Np = _choose_point_tile(N, B, C_in, mlp_list, features.dtype.itemsize,
                                point_tile)
    if Np != N:
        features = jnp.pad(features, ((0, 0), (0, 0), (0, Np - N)))

    # bf16 weights for the MXU (tiny casts); biases / clamp constants stay f32.
    w_bf16 = [w.astype(jnp.bfloat16) for w in mlp_w]
    reg_w_bf16 = reg_w.astype(jnp.bfloat16)
    lo = min_off.reshape(3, 1).astype(jnp.float32)

    per_point = lambda c, dt=None: pl.BlockSpec((1, c, TN), lambda b, n: (b, 0, n))
    const = lambda a: pl.BlockSpec(a.shape, lambda b, n: (0,) * a.ndim)

    in_specs = [per_point(C_in)]
    args = [features]
    for w, bb in zip(w_bf16, mlp_b):
        in_specs += [const(w), const(bb)]
        args += [w, bb]
    in_specs += [const(reg_w_bf16), const(reg_b), const(lo)]
    args += [reg_w_bf16, reg_b, lo]

    out_shape = (
        jax.ShapeDtypeStruct((B, c_last, Np), jnp.bfloat16),      # new_features (NCW, bf16)
        jax.ShapeDtypeStruct((B, 3, Np), jnp.float32),            # clamped offsets (CF)
        jax.ShapeDtypeStruct((B, 3, Np), jnp.float32),            # raw ctr_offsets (CF)
    )
    out_specs = [per_point(c_last), per_point(3), per_point(3)]

    # VMEM budget: double-buffered IO blocks + resident weights + internal
    # scratch (f32 accumulators + bf16 activations), capped for v7x's 64 MiB.
    c_max = max([C_in] + mlp_list + [3])
    io_block = TN * (C_in * features.dtype.itemsize + c_last * 2 + 2 * 3 * 4)
    weight_bytes = sum(int(w.size) * 2 + int(b.size) * 4 for w, b in zip(w_bf16, mlp_b))
    weight_bytes += int(reg_w_bf16.size) * 2 + 4 * (int(reg_b.size) + 3)
    scratch_bytes = 2 * TN * c_max * (4 + 2)
    vmem_limit = int(min(40 << 20,
                         max(16 << 20,
                             2 * io_block + 2 * weight_bytes + scratch_bytes + (2 << 20))))

    new_features, lim_cn, off_cn = pl.pallas_call(
        _make_vote_kernel(n_layers),
        out_shape=out_shape,
        grid_spec=pltpu.PrefetchScalarGridSpec(
            num_scalar_prefetch=0,
            grid=(B, Np // TN),
            in_specs=in_specs,
            out_specs=out_specs,
        ),
        compiler_params=pltpu.CompilerParams(
            dimension_semantics=("parallel", "parallel"),
            vmem_limit_bytes=vmem_limit,
        ),
    )(*args)

    # Drop point padding; tiny (B, 3, N) -> (B, N, 3) transposes + xyz add fuse in XLA.
    ctr_offsets = jnp.transpose(off_cn[:, :, :N], (0, 2, 1))
    limited = jnp.transpose(lim_cn[:, :, :N], (0, 2, 1))
    new_xyz = xyz + limited
    new_features = new_features[:, :, :N]
    return new_xyz, new_features, ctr_offsets


def init_params(key, pre_channel, mlp_list, max_translate_range, eps=1e-5):
    """Deterministic synthetic parameters; eval-mode BN folded into weight/bias."""
    mlp_w, mlp_b = [], []
    c_in = pre_channel
    for c_out in mlp_list:
        key, k1, k2, k3, k4, k5 = jax.random.split(key, 6)
        w = jax.random.normal(k1, (c_out, c_in), jnp.float32) * 0.1    # Conv1d weight (no bias)
        gamma = 1.0 + 0.1 * jax.random.normal(k2, (c_out,), jnp.float32)
        beta = 0.1 * jax.random.normal(k3, (c_out,), jnp.float32)
        r_mean = 0.05 * jax.random.normal(k4, (c_out,), jnp.float32)
        r_var = 1.0 + 0.1 * jax.random.uniform(k5, (c_out,), jnp.float32)
        scale = gamma / jnp.sqrt(r_var + eps)
        bias = beta - r_mean * scale
        mlp_w.append(w * scale[:, None])              # fold BN scale into the conv weight
        mlp_b.append(bias.reshape(c_out, 1))          # folded BN bias, channels-first
        c_in = c_out
    key, k1, k2 = jax.random.split(key, 3)
    reg_w = jax.random.normal(k1, (3, c_in), jnp.float32) * 0.1        # ctr_reg weight
    reg_b = 0.1 * jax.random.normal(k2, (3,), jnp.float32)             # ctr_reg bias
    return {
        "mlp_w": mlp_w,
        "mlp_b": mlp_b,
        "reg_w": reg_w,                               # (3, c_last)
        "reg_b": reg_b.reshape(3, 1),
        "min_off": jnp.asarray(max_translate_range, jnp.float32).reshape(3, 1),
    }


def reference_forward(xyz, features, params):
    """Pure-JAX reference mirroring the PyTorch forward (bf16 MXU chain like the kernel)."""
    h = features.astype(jnp.bfloat16)                              # (B, C, N)
    for w, b in zip(params["mlp_w"], params["mlp_b"]):
        acc = jnp.einsum("oc,bcn->bon", w.astype(jnp.bfloat16), h,
                         preferred_element_type=jnp.float32)
        h = jnp.maximum(acc + b, 0.0).astype(jnp.bfloat16)
    off = jnp.einsum("oc,bcn->bon", params["reg_w"].astype(jnp.bfloat16), h,
                     preferred_element_type=jnp.float32) + params["reg_b"]   # (B, 3, N)
    off_t = jnp.transpose(off, (0, 2, 1))                          # (B, N, 3)
    min_off = params["min_off"].reshape(1, 1, 3)
    limited = jnp.where(off_t < min_off, min_off, off_t)
    limited = jnp.where(limited > -min_off, -min_off, limited)
    new_xyz = xyz + limited
    return new_xyz, h, off_t


if __name__ == "__main__":
    B, N = 2, 512
    pre_channel = 32
    mlp_list = [32, 64]
    # Negative values, as the module's where-pair semantics expect (see PyTorch spec).
    max_translate_range = [-3.0, -3.0, -2.0]

    key = jax.random.PRNGKey(0)
    kp, kx, kf = jax.random.split(key, 3)
    params = init_params(kp, pre_channel, mlp_list, max_translate_range)
    xyz = jax.random.normal(kx, (B, N, 3), jnp.float32) * 10.0
    features = jax.random.normal(kf, (B, pre_channel, N), jnp.float32)

    fwd = jax.jit(vote_layer_3dssd_forward)
    new_xyz, new_features, ctr_offsets = fwd(xyz, features, params)
    jax.block_until_ready((new_xyz, new_features, ctr_offsets))

    ref_xyz, ref_feat, ref_off = reference_forward(xyz, features, params)
    assert new_xyz.shape == (B, N, 3)
    assert new_features.shape == (B, mlp_list[-1], N)
    assert new_features.dtype == jnp.bfloat16
    assert ctr_offsets.shape == (B, N, 3)
    assert jnp.allclose(new_xyz, ref_xyz, atol=1e-2, rtol=1e-2)
    assert jnp.allclose(new_features.astype(jnp.float32),
                        ref_feat.astype(jnp.float32), atol=1e-2, rtol=1e-2)
    assert jnp.allclose(ctr_offsets, ref_off, atol=1e-2, rtol=1e-2)

    print("KERNEL_OK")
</pallas_src>

<mosaic_0001>
module attributes {stable_mosaic.version = 11 : i64} {
  func.func @kernel(%arg0: i32, %arg1: i32, %arg2: memref<1x32x512xf32, #tpu.memory_space<vmem>>, %arg3: memref<32x32xbf16, #tpu.memory_space<vmem>>, %arg4: memref<32x1xf32, #tpu.memory_space<vmem>>, %arg5: memref<64x32xbf16, #tpu.memory_space<vmem>>, %arg6: memref<64x1xf32, #tpu.memory_space<vmem>>, %arg7: memref<3x64xbf16, #tpu.memory_space<vmem>>, %arg8: memref<3x1xf32, #tpu.memory_space<vmem>>, %arg9: memref<3x1xf32, #tpu.memory_space<vmem>>, %arg10: memref<1x64x512xbf16, #tpu.memory_space<vmem>>, %arg11: memref<1x3x512xf32, #tpu.memory_space<vmem>>, %arg12: memref<1x3x512xf32, #tpu.memory_space<vmem>>) attributes {dimension_semantics = [#tpu.dimension_semantics<parallel>, #tpu.dimension_semantics<parallel>], iteration_bounds = array<i64: 2, 1>, scalar_prefetch = 0 : i64, scratch_operands = 0 : i64, tpu.core_type = #tpu.core_type<tc>, window_params = [{transform_indices = @transform_0, window_bounds = array<i64: 1, 32, 512>}, {pipeline_mode = #tpu.pipeline_mode<synchronous>, transform_indices = @transform_1, window_bounds = array<i64: 32, 32>}, {pipeline_mode = #tpu.pipeline_mode<synchronous>, transform_indices = @transform_2, window_bounds = array<i64: 32, 1>}, {pipeline_mode = #tpu.pipeline_mode<synchronous>, transform_indices = @transform_3, window_bounds = array<i64: 64, 32>}, {pipeline_mode = #tpu.pipeline_mode<synchronous>, transform_indices = @transform_4, window_bounds = array<i64: 64, 1>}, {pipeline_mode = #tpu.pipeline_mode<synchronous>, transform_indices = @transform_5, window_bounds = array<i64: 3, 64>}, {pipeline_mode = #tpu.pipeline_mode<synchronous>, transform_indices = @transform_6, window_bounds = array<i64: 3, 1>}, {pipeline_mode = #tpu.pipeline_mode<synchronous>, transform_indices = @transform_7, window_bounds = array<i64: 3, 1>}, {transform_indices = @transform_8, window_bounds = array<i64: 1, 64, 512>}, {transform_indices = @transform_9, window_bounds = array<i64: 1, 3, 512>}, {transform_indices = @transform_10, window_bounds = array<i64: 1, 3, 512>}]} {
    %c0 = arith.constant 0 : index
    %c0_0 = arith.constant 0 : index
    %c0_1 = arith.constant 0 : index
    %0 = vector.load %arg2[%c0, %c0_0, %c0_1] : memref<1x32x512xf32, #tpu.memory_space<vmem>>, vector<1x32x512xf32>
    %1 = vector.shape_cast %0 : vector<1x32x512xf32> to vector<32x512xf32>
    %2 = arith.truncf %1 : vector<32x512xf32> to vector<32x512xbf16>
    %c0_2 = arith.constant 0 : index
    %c0_3 = arith.constant 0 : index
    %3 = vector.load %arg3[%c0_2, %c0_3] : memref<32x32xbf16, #tpu.memory_space<vmem>>, vector<32x32xbf16>
    %c0_4 = arith.constant 0 : index
    %c0_5 = arith.constant 0 : index
    %4 = vector.load %arg4[%c0_4, %c0_5] : memref<32x1xf32, #tpu.memory_space<vmem>>, vector<32x1xf32>
    %cst = arith.constant dense<0.000000e+00> : vector<32x512xf32>
    %5 = tpu.matmul %3, %2, %cst {dimension_numbers = #tpu.dot_dimension_numbers<[1], [0], [0], [1], [0, 0, 1, 1], [], []>} : vector<32x32xbf16>, vector<32x512xbf16>, vector<32x512xf32> -> vector<32x512xf32>
    %6 = vector.broadcast %4 : vector<32x1xf32> to vector<32x512xf32>
    %7 = arith.addf %5, %6 : vector<32x512xf32>
    %cst_6 = arith.constant 0.000000e+00 : f32
    %8 = vector.broadcast %cst_6 : f32 to vector<32x512xf32>
    %9 = arith.maximumf %7, %8 : vector<32x512xf32>
    %10 = arith.truncf %9 : vector<32x512xf32> to vector<32x512xbf16>
    %c0_7 = arith.constant 0 : index
    %c0_8 = arith.constant 0 : index
    %11 = vector.load %arg5[%c0_7, %c0_8] : memref<64x32xbf16, #tpu.memory_space<vmem>>, vector<64x32xbf16>
    %c0_9 = arith.constant 0 : index
    %c0_10 = arith.constant 0 : index
    %12 = vector.load %arg6[%c0_9, %c0_10] : memref<64x1xf32, #tpu.memory_space<vmem>>, vector<64x1xf32>
    %cst_11 = arith.constant dense<0.000000e+00> : vector<64x512xf32>
    %13 = tpu.matmul %11, %10, %cst_11 {dimension_numbers = #tpu.dot_dimension_numbers<[1], [0], [0], [1], [0, 0, 1, 1], [], []>} : vector<64x32xbf16>, vector<32x512xbf16>, vector<64x512xf32> -> vector<64x512xf32>
    %14 = vector.broadcast %12 : vector<64x1xf32> to vector<64x512xf32>
    %15 = arith.addf %13, %14 : vector<64x512xf32>
    %cst_12 = arith.constant 0.000000e+00 : f32
    %16 = vector.broadcast %cst_12 : f32 to vector<64x512xf32>
    %17 = arith.maximumf %15, %16 : vector<64x512xf32>
    %18 = arith.truncf %17 : vector<64x512xf32> to vector<64x512xbf16>
    %c0_13 = arith.constant 0 : index
    %c0_14 = arith.constant 0 : index
    %19 = vector.load %arg7[%c0_13, %c0_14] : memref<3x64xbf16, #tpu.memory_space<vmem>>, vector<3x64xbf16>
    %c0_15 = arith.constant 0 : index
    %c0_16 = arith.constant 0 : index
    %20 = vector.load %arg8[%c0_15, %c0_16] : memref<3x1xf32, #tpu.memory_space<vmem>>, vector<3x1xf32>
    %c0_17 = arith.constant 0 : index
    %c0_18 = arith.constant 0 : index
    %21 = vector.load %arg9[%c0_17, %c0_18] : memref<3x1xf32, #tpu.memory_space<vmem>>, vector<3x1xf32>
    %cst_19 = arith.constant dense<0.000000e+00> : vector<3x512xf32>
    %22 = tpu.matmul %19, %18, %cst_19 {dimension_numbers = #tpu.dot_dimension_numbers<[1], [0], [0], [1], [0, 0, 1, 1], [], []>} : vector<3x64xbf16>, vector<64x512xbf16>, vector<3x512xf32> -> vector<3x512xf32>
    %23 = vector.broadcast %20 : vector<3x1xf32> to vector<3x512xf32>
    %24 = arith.addf %22, %23 : vector<3x512xf32>
    %cst_20 = arith.constant 0.000000e+00 : f32
    %25 = vector.broadcast %cst_20 : f32 to vector<3x1xf32>
    %26 = arith.subf %25, %21 : vector<3x1xf32>
    %27 = vector.broadcast %21 : vector<3x1xf32> to vector<3x512xf32>
    %28 = arith.cmpf olt, %24, %27 : vector<3x512xf32>
    %29 = vector.shape_cast %21 : vector<3x1xf32> to vector<3x1xf32>
    %30 = vector.broadcast %29 : vector<3x1xf32> to vector<3x512xf32>
    %31 = arith.select %28, %30, %24 : vector<3x512xi1>, vector<3x512xf32>
    %32 = vector.broadcast %26 : vector<3x1xf32> to vector<3x512xf32>
    %33 = arith.cmpf ogt, %31, %32 : vector<3x512xf32>
    %34 = vector.shape_cast %26 : vector<3x1xf32> to vector<3x1xf32>
    %35 = vector.broadcast %34 : vector<3x1xf32> to vector<3x512xf32>
    %36 = arith.select %33, %35, %31 : vector<3x512xi1>, vector<3x512xf32>
    %c0_21 = arith.constant 0 : index
    %c0_22 = arith.constant 0 : index
    %c0_23 = arith.constant 0 : index
    %37 = vector.load %arg10[%c0_21, %c0_22, %c0_23] : memref<1x64x512xbf16, #tpu.memory_space<vmem>>, vector<1x64x512xbf16>
    %38 = vector.shape_cast %37 : vector<1x64x512xbf16> to vector<64x512xbf16>
    %39 = vector.shape_cast %18 : vector<64x512xbf16> to vector<1x64x512xbf16>
    tpu.vector_store %arg10[%c0_21, %c0_22, %c0_23], %39 {strides = array<i32>} : memref<1x64x512xbf16, #tpu.memory_space<vmem>>, vector<1x64x512xbf16>,
    %c0_24 = arith.constant 0 : index
    %c0_25 = arith.constant 0 : index
    %c0_26 = arith.constant 0 : index
    %40 = vector.load %arg11[%c0_24, %c0_25, %c0_26] : memref<1x3x512xf32, #tpu.memory_space<vmem>>, vector<1x3x512xf32>
    %41 = vector.shape_cast %40 : vector<1x3x512xf32> to vector<3x512xf32>
    %42 = vector.shape_cast %36 : vector<3x512xf32> to vector<1x3x512xf32>
    tpu.vector_store %arg11[%c0_24, %c0_25, %c0_26], %42 {strides = array<i32>} : memref<1x3x512xf32, #tpu.memory_space<vmem>>, vector<1x3x512xf32>,
    %c0_27 = arith.constant 0 : index
    %c0_28 = arith.constant 0 : index
    %c0_29 = arith.constant 0 : index
    %43 = vector.load %arg12[%c0_27, %c0_28, %c0_29] : memref<1x3x512xf32, #tpu.memory_space<vmem>>, vector<1x3x512xf32>
    %44 = vector.shape_cast %43 : vector<1x3x512xf32> to vector<3x512xf32>
    %45 = vector.shape_cast %24 : vector<3x512xf32> to vector<1x3x512xf32>
    tpu.vector_store %arg12[%c0_27, %c0_28, %c0_29], %45 {strides = array<i32>} : memref<1x3x512xf32, #tpu.memory_space<vmem>>, vector<1x3x512xf32>,
    return
  }
  func.func @transform_0(%arg0: i32, %arg1: i32) -> (i32, i32, i32) {
    %c0_i32 = arith.constant 0 : i32
    %c0_i32_0 = arith.constant 0 : i32
    return %arg0, %c0_i32, %arg1 : i32, i32, i32
  }
  func.func @transform_1(%arg0: i32, %arg1: i32) -> (i32, i32) {
    %c0_i32 = arith.constant 0 : i32
    %c0_i32_0 = arith.constant 0 : i32
    %c0_i32_1 = arith.constant 0 : i32
    return %c0_i32, %c0_i32_0 : i32, i32
  }
  func.func @transform_2(%arg0: i32, %arg1: i32) -> (i32, i32) {
    %c0_i32 = arith.constant 0 : i32
    %c0_i32_0 = arith.constant 0 : i32
    %c0_i32_1 = arith.constant 0 : i32
    return %c0_i32, %c0_i32_0 : i32, i32
  }
  func.func @transform_3(%arg0: i32, %arg1: i32) -> (i32, i32) {
    %c0_i32 = arith.constant 0 : i32
    %c0_i32_0 = arith.constant 0 : i32
    %c0_i32_1 = arith.constant 0 : i32
    return %c0_i32, %c0_i32_0 : i32, i32
  }
  func.func @transform_4(%arg0: i32, %arg1: i32) -> (i32, i32) {
    %c0_i32 = arith.constant 0 : i32
    %c0_i32_0 = arith.constant 0 : i32
    %c0_i32_1 = arith.constant 0 : i32
    return %c0_i32, %c0_i32_0 : i32, i32
  }
  func.func @transform_5(%arg0: i32, %arg1: i32) -> (i32, i32) {
    %c0_i32 = arith.constant 0 : i32
    %c0_i32_0 = arith.constant 0 : i32
    %c0_i32_1 = arith.constant 0 : i32
    return %c0_i32, %c0_i32_0 : i32, i32
  }
  func.func @transform_6(%arg0: i32, %arg1: i32) -> (i32, i32) {
    %c0_i32 = arith.constant 0 : i32
    %c0_i32_0 = arith.constant 0 : i32
    %c0_i32_1 = arith.constant 0 : i32
    return %c0_i32, %c0_i32_0 : i32, i32
  }
  func.func @transform_7(%arg0: i32, %arg1: i32) -> (i32, i32) {
    %c0_i32 = arith.constant 0 : i32
    %c0_i32_0 = arith.constant 0 : i32
    %c0_i32_1 = arith.constant 0 : i32
    return %c0_i32, %c0_i32_0 : i32, i32
  }
  func.func @transform_8(%arg0: i32, %arg1: i32) -> (i32, i32, i32) {
    %c0_i32 = arith.constant 0 : i32
    %c0_i32_0 = arith.constant 0 : i32
    return %arg0, %c0_i32, %arg1 : i32, i32, i32
  }
  func.func @transform_9(%arg0: i32, %arg1: i32) -> (i32, i32, i32) {
    %c0_i32 = arith.constant 0 : i32
    %c0_i32_0 = arith.constant 0 : i32
    return %arg0, %c0_i32, %arg1 : i32, i32, i32
  }
  func.func @transform_10(%arg0: i32, %arg1: i32) -> (i32, i32, i32) {
    %c0_i32 = arith.constant 0 : i32
    %c0_i32_0 = arith.constant 0 : i32
    return %arg0, %c0_i32, %arg1 : i32, i32, i32
  }
}

</mosaic_0001>

<llo_original>
// kernel: vote_layer_3dssd_forward.1
$region0: #{vote_layer_3dssd_forward.1}
  #allocation0 [shape = 'u32[]', space=smem, size = 0x4, offset = 0x4, fixed_abs, tag = 'smem constant byte address 0x4 - core index']
  #allocation1 [shape = 'u32[144,128]{1,0:T(1,128)}', space=vmem, size = 0x12000, scoped, tag = 'internal scratch']
  %s0 = inlined_call_operand.vmem [shape: f32[2,32,512], index: 0, kind: input, shape index: {}]
  %s1 = inlined_call_operand.vmem [shape: bf16[32,32], index: 1, kind: input, shape index: {}]
  %s2 = inlined_call_operand.vmem [shape: f32[32,1], index: 2, kind: input, shape index: {}]
  %s3 = inlined_call_operand.vmem [shape: bf16[64,32], index: 3, kind: input, shape index: {}]
  %s4 = inlined_call_operand.vmem [shape: f32[64,1], index: 4, kind: input, shape index: {}]
  %s5 = inlined_call_operand.vmem [shape: bf16[3,64], index: 5, kind: input, shape index: {}]
  %s6 = inlined_call_operand.vmem [shape: f32[3,1], index: 6, kind: input, shape index: {}]
  %s7 = inlined_call_operand.vmem [shape: f32[3,1], index: 7, kind: input, shape index: {}]
  %s8 = inlined_call_operand.hbm [shape: bf16[2,64,512], index: 8, kind: output, shape index: {0}]
  %s9 = inlined_call_operand.vmem [shape: f32[2,3,512], index: 9, kind: output, shape index: {1}]
  %s10 = inlined_call_operand.vmem [shape: f32[2,3,512], index: 10, kind: output, shape index: {2}]
  %11 = xla_tuple %s8, %s9, %s10
  %s12 = sld [smem:[#allocation0]]
  $region81: #{vote_layer_3dssd_forward.1} parent=0
    _
  %s14 = ssub.s32 1, %s12
  %s15 = scalar_select 0, %s14, %s12
  $region1: #{vote_layer_3dssd_forward.1} parent=0
    #allocation2 [shape = 'u8[131072]{0}', space=vmem, size = 0x20000, scoped, tag = 'output window, operand 0']
    #allocation3 [shape = 's32[2]{0}', space=sflag, size = 0x8, scoped, tag = 'scoped memory for vote_layer_3dssd_forward.1']
    %16 = vsyncpa [#allocation3], 0
    %s17 = scalar_lea.sflag [#allocation3], 1
    %18 = vsyncpa %s17, 0
    loop: start=0, step=1, limit=4
    $region2: #{vote_layer_3dssd_forward.1} parent=1 // loop_pre_header
      _
    $region3: #{vote_layer_3dssd_forward.1} parent=1 // loop_header
      %s20 = sphi 0, %s24
      %p21 = scmp.ge.s32.totalorder %s20, 4
      %s27 = sphi 0, %s39
      %s28 = sphi 0, %s35
      %s29 = sphi 0, %s27
      %s30 = sphi 0, %s28
      %s31 = sphi 0, %s29
      %s32 = sphi 0, %s30
      %s44 = sphi 0, %s46
      %s47 = sphi 0, %s44
      %s48 = sphi 0, %s47
      %s64 = sphi 0, %s48
      %s68 = sphi 0, %s68
      %s70 = sphi 0, %s68
      %s71 = sphi 0, %s70
      %s85 = sphi 0, %s71
      %s89 = sphi 0, %s89
      %s91 = sphi 0, %s89
      %s92 = sphi 0, %s91
      %s106 = sphi 0, %s92
      %s110 = sphi 0, %s110
      %s112 = sphi 0, %s110
      %s113 = sphi 0, %s112
      %s127 = sphi 0, %s113
      %s131 = sphi 0, %s131
      %s133 = sphi 0, %s131
      %s134 = sphi 0, %s133
      %s148 = sphi 0, %s134
      %s152 = sphi 0, %s152
      %s154 = sphi 0, %s152
      %s155 = sphi 0, %s154
      %s169 = sphi 0, %s155
      %s173 = sphi 0, %s173
      %s175 = sphi 0, %s173
      %s176 = sphi 0, %s175
      %s190 = sphi 0, %s176
      %s194 = sphi 0, %s194
      %s196 = sphi 0, %s194
      %s197 = sphi 0, %s196
      %s211 = sphi 0, %s197
      %s219 = sphi 0, %s221
      %s222 = sphi 0, %s219
      %s223 = sphi 0, %s222
      %s239 = sphi 0, %s223
      %s247 = sphi 0, %s249
      %s250 = sphi 0, %s247
      %s251 = sphi 0, %s250
      %s267 = sphi 0, %s251
      %s275 = sphi 0, %s277
      %s278 = sphi 0, %s275
      %s279 = sphi 0, %s278
      %s295 = sphi 0, %s279
    $region4: #{vote_layer_3dssd_forward.1} parent=1 // loop_header_branch
      %23 = sbr.rel (%p21) target = $region8
    $region5: #{vote_layer_3dssd_forward.1} parent=1 // loop_body
      %s25 = ssub.s32 %s20, 1
      %s26 = ssub.s32 %s20, 2
      %s33 = sadd.s32 1, %s28
      %p34 = scmp.ge.s32.totalorder %s33, 1
      %s35 = scalar_select %p34, 0, %s33
      %s36 = sadd.s32 1, %s27
      %s37 = scalar_select %p34, %s36, %s27
      %p38 = scmp.ge.s32.totalorder %s37, 2
      %s39 = scalar_select %p38, 0, %s37
      %s40 = ssub.s32 %s27, %s39
      %s41 = ssub.s32 %s28, %s35
      %s42 = sor.u32 %s40, %s41
      %p43 = scmp.eq.s32.totalorder %s42, 0
      %s45 = sadd.s32 %s44, 1
      %s46 = scalar_select %p43, %s44, %s45
      %p49 = pneg %p43
      %p50 = scmp.eq.s32.totalorder %s20, 1
      %p51 = por %p49, %p50
      %p52 = scmp.ne.s32.totalorder %s44, %s47
      %p53 = scmp.eq.s32.totalorder %s20, 0
      %p54 = por %p52, %p53
      %p55 = scmp.ne.s32.totalorder %s44, %s47
      %p56 = scmp.eq.s32.totalorder %s25, 1
      %p57 = por %p55, %p56
      %p58 = scmp.ne.s32.totalorder %s47, %s48
      %p59 = scmp.eq.s32.totalorder %s25, 0
      %p60 = por %p58, %p59
      %p61 = scmp.ne.s32.totalorder %s47, %s48
      %p62 = scmp.eq.s32.totalorder %s26, 1
      %p63 = por %p61, %p62
      %p65 = scmp.ne.s32.totalorder %s48, %s64
      %p66 = scmp.eq.s32.totalorder %s26, 0
      %p67 = por %p65, %p66
      %s69 = sadd.s32 %s68, 1
      %p72 = scmp.eq.s32.totalorder %s20, 1
      %p73 = scmp.ne.s32.totalorder %s68, %s70
      %p74 = scmp.eq.s32.totalorder %s20, 0
      %p75 = por %p73, %p74
      %p76 = scmp.ne.s32.totalorder %s68, %s70
      %p77 = scmp.eq.s32.totalorder %s25, 1
      %p78 = por %p76, %p77
      %p79 = scmp.ne.s32.totalorder %s70, %s71
      %p80 = scmp.eq.s32.totalorder %s25, 0
      %p81 = por %p79, %p80
      %p82 = scmp.ne.s32.totalorder %s70, %s71
      %p83 = scmp.eq.s32.totalorder %s26, 1
      %p84 = por %p82, %p83
      %p86 = scmp.ne.s32.totalorder %s71, %s85
      %p87 = scmp.eq.s32.totalorder %s26, 0
      %p88 = por %p86, %p87
      %s90 = sadd.s32 %s89, 1
      %p93 = scmp.eq.s32.totalorder %s20, 1
      %p94 = scmp.ne.s32.totalorder %s89, %s91
      %p95 = scmp.eq.s32.totalorder %s20, 0
      %p96 = por %p94, %p95
      %p97 = scmp.ne.s32.totalorder %s89, %s91
      %p98 = scmp.eq.s32.totalorder %s25, 1
      %p99 = por %p97, %p98
      %p100 = scmp.ne.s32.totalorder %s91, %s92
      %p101 = scmp.eq.s32.totalorder %s25, 0
      %p102 = por %p100, %p101
      %p103 = scmp.ne.s32.totalorder %s91, %s92
      %p104 = scmp.eq.s32.totalorder %s26, 1
      %p105 = por %p103, %p104
      %p107 = scmp.ne.s32.totalorder %s92, %s106
      %p108 = scmp.eq.s32.totalorder %s26, 0
      %p109 = por %p107, %p108
      %s111 = sadd.s32 %s110, 1
      %p114 = scmp.eq.s32.totalorder %s20, 1
      %p115 = scmp.ne.s32.totalorder %s110, %s112
      %p116 = scmp.eq.s32.totalorder %s20, 0
      %p117 = por %p115, %p116
      %p118 = scmp.ne.s32.totalorder %s110, %s112
      %p119 = scmp.eq.s32.totalorder %s25, 1
      %p120 = por %p118, %p119
      %p121 = scmp.ne.s32.totalorder %s112, %s113
      %p122 = scmp.eq.s32.totalorder %s25, 0
      %p123 = por %p121, %p122
      %p124 = scmp.ne.s32.totalorder %s112, %s113
      %p125 = scmp.eq.s32.totalorder %s26, 1
      %p126 = por %p124, %p125
      %p128 = scmp.ne.s32.totalorder %s113, %s127
      %p129 = scmp.eq.s32.totalorder %s26, 0
      %p130 = por %p128, %p129
      %s132 = sadd.s32 %s131, 1
      %p135 = scmp.eq.s32.totalorder %s20, 1
      %p136 = scmp.ne.s32.totalorder %s131, %s133
      %p137 = scmp.eq.s32.totalorder %s20, 0
      %p138 = por %p136, %p137
      %p139 = scmp.ne.s32.totalorder %s131, %s133
      %p140 = scmp.eq.s32.totalorder %s25, 1
      %p141 = por %p139, %p140
      %p142 = scmp.ne.s32.totalorder %s133, %s134
      %p143 = scmp.eq.s32.totalorder %s25, 0
      %p144 = por %p142, %p143
      %p145 = scmp.ne.s32.totalorder %s133, %s134
      %p146 = scmp.eq.s32.totalorder %s26, 1
      %p147 = por %p145, %p146
      %p149 = scmp.ne.s32.totalorder %s134, %s148
      %p150 = scmp.eq.s32.totalorder %s26, 0
      %p151 = por %p149, %p150
      %s153 = sadd.s32 %s152, 1
      %p156 = scmp.eq.s32.totalorder %s20, 1
      %p157 = scmp.ne.s32.totalorder %s152, %s154
      %p158 = scmp.eq.s32.totalorder %s20, 0
      %p159 = por %p157, %p158
      %p160 = scmp.ne.s32.totalorder %s152, %s154
      %p161 = scmp.eq.s32.totalorder %s25, 1
      %p162 = por %p160, %p161
      %p163 = scmp.ne.s32.totalorder %s154, %s155
      %p164 = scmp.eq.s32.totalorder %s25, 0
      %p165 = por %p163, %p164
      %p166 = scmp.ne.s32.totalorder %s154, %s155
      %p167 = scmp.eq.s32.totalorder %s26, 1
      %p168 = por %p166, %p167
      %p170 = scmp.ne.s32.totalorder %s155, %s169
      %p171 = scmp.eq.s32.totalorder %s26, 0
      %p172 = por %p170, %p171
      %s174 = sadd.s32 %s173, 1
      %p177 = scmp.eq.s32.totalorder %s20, 1
      %p178 = scmp.ne.s32.totalorder %s173, %s175
      %p179 = scmp.eq.s32.totalorder %s20, 0
      %p180 = por %p178, %p179
      %p181 = scmp.ne.s32.totalorder %s173, %s175
      %p182 = scmp.eq.s32.totalorder %s25, 1
      %p183 = por %p181, %p182
      %p184 = scmp.ne.s32.totalorder %s175, %s176
      %p185 = scmp.eq.s32.totalorder %s25, 0
      %p186 = por %p184, %p185
      %p187 = scmp.ne.s32.totalorder %s175, %s176
      %p188 = scmp.eq.s32.totalorder %s26, 1
      %p189 = por %p187, %p188
      %p191 = scmp.ne.s32.totalorder %s176, %s190
      %p192 = scmp.eq.s32.totalorder %s26, 0
      %p193 = por %p191, %p192
      %s195 = sadd.s32 %s194, 1
      %p198 = scmp.eq.s32.totalorder %s20, 1
      %p199 = scmp.ne.s32.totalorder %s194, %s196
      %p200 = scmp.eq.s32.totalorder %s20, 0
      %p201 = por %p199, %p200
      %p202 = scmp.ne.s32.totalorder %s194, %s196
      %p203 = scmp.eq.s32.totalorder %s25, 1
      %p204 = por %p202, %p203
      %p205 = scmp.ne.s32.totalorder %s196, %s197
      %p206 = scmp.eq.s32.totalorder %s25, 0
      %p207 = por %p205, %p206
      %p208 = scmp.ne.s32.totalorder %s196, %s197
      %p209 = scmp.eq.s32.totalorder %s26, 1
      %p210 = por %p208, %p209
      %p212 = scmp.ne.s32.totalorder %s197, %s211
      %p213 = scmp.eq.s32.totalorder %s26, 0
      %p214 = por %p212, %p213
      %s215 = ssub.s32 %s27, %s39
      %s216 = ssub.s32 %s28, %s35
      %s217 = sor.u32 %s215, %s216
      %p218 = scmp.eq.s32.totalorder %s217, 0
      %s220 = sadd.s32 %s219, 1
      %s221 = scalar_select %p218, %s219, %s220
      %p224 = pneg %p218
      %p225 = scmp.eq.s32.totalorder %s20, 1
      %p226 = por %p224, %p225
      %p227 = scmp.ne.s32.totalorder %s219, %s222
      %p228 = scmp.eq.s32.totalorder %s20, 0
      %p229 = por %p227, %p228
      %p230 = scmp.ne.s32.totalorder %s219, %s222
      %p231 = scmp.eq.s32.totalorder %s25, 1
      %p232 = por %p230, %p231
      %p233 = scmp.ne.s32.totalorder %s222, %s223
      %p234 = scmp.eq.s32.totalorder %s25, 0
      %p235 = por %p233, %p234
      %p236 = scmp.ne.s32.totalorder %s222, %s223
      %p237 = scmp.eq.s32.totalorder %s26, 1
      %p238 = por %p236, %p237
      %p240 = scmp.ne.s32.totalorder %s223, %s239
      %p241 = scmp.eq.s32.totalorder %s26, 0
      %p242 = por %p240, %p241
      %s243 = ssub.s32 %s27, %s39
      %s244 = ssub.s32 %s28, %s35
      %s245 = sor.u32 %s243, %s244
      %p246 = scmp.eq.s32.totalorder %s245, 0
      %s248 = sadd.s32 %s247, 1
      %s249 = scalar_select %p246, %s247, %s248
      %p252 = pneg %p246
      %p253 = scmp.eq.s32.totalorder %s20, 1
      %p254 = por %p252, %p253
      %p255 = scmp.ne.s32.totalorder %s247, %s250
      %p256 = scmp.eq.s32.totalorder %s20, 0
      %p257 = por %p255, %p256
      %p258 = scmp.ne.s32.totalorder %s247, %s250
      %p259 = scmp.eq.s32.totalorder %s25, 1
      %p260 = por %p258, %p259
      %p261 = scmp.ne.s32.totalorder %s250, %s251
      %p262 = scmp.eq.s32.totalorder %s25, 0
      %p263 = por %p261, %p262
      %p264 = scmp.ne.s32.totalorder %s250, %s251
      %p265 = scmp.eq.s32.totalorder %s26, 1
      %p266 = por %p264, %p265
      %p268 = scmp.ne.s32.totalorder %s251, %s267
      %p269 = scmp.eq.s32.totalorder %s26, 0
      %p270 = por %p268, %p269
      %s271 = ssub.s32 %s27, %s39
      %s272 = ssub.s32 %s28, %s35
      %s273 = sor.u32 %s271, %s272
      %p274 = scmp.eq.s32.totalorder %s273, 0
      %s276 = sadd.s32 %s275, 1
      %s277 = scalar_select %p274, %s275, %s276
      %p280 = pneg %p274
      %p281 = scmp.eq.s32.totalorder %s20, 1
      %p282 = por %p280, %p281
      %p283 = scmp.ne.s32.totalorder %s275, %s278
      %p284 = scmp.eq.s32.totalorder %s20, 0
      %p285 = por %p283, %p284
      %p286 = scmp.ne.s32.totalorder %s275, %s278
      %p287 = scmp.eq.s32.totalorder %s25, 1
      %p288 = por %p286, %p287
      %p289 = scmp.ne.s32.totalorder %s278, %s279
      %p290 = scmp.eq.s32.totalorder %s25, 0
      %p291 = por %p289, %p290
      %p292 = scmp.ne.s32.totalorder %s278, %s279
      %p293 = scmp.eq.s32.totalorder %s26, 1
      %p294 = por %p292, %p293
      %p296 = scmp.ne.s32.totalorder %s279, %s295
      %p297 = scmp.eq.s32.totalorder %s26, 0
      %p298 = por %p296, %p297
      %p299 = scmp.le.s32.totalorder 1, %s20
      %p300 = scmp.lt.s32.totalorder %s20, 3
      %p301 = pnand %p299, %p300
      %p302 = pneg %p301
      // Predicated region
      $region9: #{vote_layer_3dssd_forward.1} parent=5 // pred_check
        _
      $region10: #{vote_layer_3dssd_forward.1} parent=5 // pred_check_branch
        %304 = sbr.rel (%p301) target = $region12
      $region11: #{vote_layer_3dssd_forward.1} parent=5 // pred_region
        %s305 = ssub.s32 %s20, 1
        // Predicated region
        $region13: #{vote_layer_3dssd_forward.1} parent=11 // pred_check
          %p306 = pneg %p81
        $region14: #{vote_layer_3dssd_forward.1} parent=11 // pred_check_branch
          %308 = sbr.rel (%p306) target = $region16
        $region15: #{vote_layer_3dssd_forward.1} parent=11 // pred_region
          _
        $region16: #{vote_layer_3dssd_forward.1} parent=11 // pred_fallthru
          _
        // Predicated region
        $region17: #{vote_layer_3dssd_forward.1} parent=11 // pred_check
          %p309 = pneg %p102
        $region18: #{vote_layer_3dssd_forward.1} parent=11 // pred_check_branch
          %311 = sbr.rel (%p309) target = $region20
        $region19: #{vote_layer_3dssd_forward.1} parent=11 // pred_region
          _
        $region20: #{vote_layer_3dssd_forward.1} parent=11 // pred_fallthru
          _
        // Predicated region
        $region21: #{vote_layer_3dssd_forward.1} parent=11 // pred_check
          %p312 = pneg %p123
        $region22: #{vote_layer_3dssd_forward.1} parent=11 // pred_check_branch
          %314 = sbr.rel (%p312) target = $region24
        $region23: #{vote_layer_3dssd_forward.1} parent=11 // pred_region
          _
        $region24: #{vote_layer_3dssd_forward.1} parent=11 // pred_fallthru
          _
        // Predicated region
        $region25: #{vote_layer_3dssd_forward.1} parent=11 // pred_check
          %p315 = pneg %p144
        $region26: #{vote_layer_3dssd_forward.1} parent=11 // pred_check_branch
          %317 = sbr.rel (%p315) target = $region28
        $region27: #{vote_layer_3dssd_forward.1} parent=11 // pred_region
          _
        $region28: #{vote_layer_3dssd_forward.1} parent=11 // pred_fallthru
          _
        // Predicated region
        $region29: #{vote_layer_3dssd_forward.1} parent=11 // pred_check
          %p318 = pneg %p165
        $region30: #{vote_layer_3dssd_forward.1} parent=11 // pred_check_branch
          %320 = sbr.rel (%p318) target = $region32
        $region31: #{vote_layer_3dssd_forward.1} parent=11 // pred_region
          _
        $region32: #{vote_layer_3dssd_forward.1} parent=11 // pred_fallthru
          _
        // Predicated region
        $region33: #{vote_layer_3dssd_forward.1} parent=11 // pred_check
          %p321 = pneg %p186
        $region34: #{vote_layer_3dssd_forward.1} parent=11 // pred_check_branch
          %323 = sbr.rel (%p321) target = $region36
        $region35: #{vote_layer_3dssd_forward.1} parent=11 // pred_region
          _
        $region36: #{vote_layer_3dssd_forward.1} parent=11 // pred_fallthru
          _
        // Predicated region
        $region37: #{vote_layer_3dssd_forward.1} parent=11 // pred_check
          %p324 = pneg %p207
        $region38: #{vote_layer_3dssd_forward.1} parent=11 // pred_check_branch
          %326 = sbr.rel (%p324) target = $region40
        $region39: #{vote_layer_3dssd_forward.1} parent=11 // pred_region
          _
        $region40: #{vote_layer_3dssd_forward.1} parent=11 // pred_fallthru
          _
      $region12: #{vote_layer_3dssd_forward.1} parent=5 // pred_fallthru
        _
      %p327 = scmp.lt.s32.totalorder %s20, 2
      // Predicated region
      $region41: #{vote_layer_3dssd_forward.1} parent=5 // pred_check
        %p328 = pneg %p327
      $region42: #{vote_layer_3dssd_forward.1} parent=5 // pred_check_branch
        %330 = sbr.rel (%p328) target = $region44
      $region43: #{vote_layer_3dssd_forward.1} parent=5 // pred_region
        // Predicated region
        $region45: #{vote_layer_3dssd_forward.1} parent=43 // pred_check
          %p331 = pneg %p54
        $region46: #{vote_layer_3dssd_forward.1} parent=43 // pred_check_branch
          %333 = sbr.rel (%p331) target = $region48
        $region47: #{vote_layer_3dssd_forward.1} parent=43 // pred_region
          %s334 = smul.u32 4, %s28
          %p335 = scmp.lt.s32.totalorder %s27, 1
          %s336 = scalar_select %p335, %s27, 1
          %p337 = scmp.lt.s32.totalorder %s334, 3
          %s338 = scalar_select %p337, %s334, 3
          %s339 = smul.addr %s336, 16
          %s340 = sadd.s32 %s338, %s339
          %s341 = smul.addr %s340, 8
          %s342 = scalar_lea.vmem %s0, %s341
          %s343 = smul.u32 4, %s28
        $region48: #{vote_layer_3dssd_forward.1} parent=43 // pred_fallthru
          _
      $region44: #{vote_layer_3dssd_forward.1} parent=5 // pred_fallthru
        _
      %p344 = scmp.le.s32.totalorder 1, %s20
      %p345 = scmp.lt.s32.totalorder %s20, 3
      %p346 = pnand %p344, %p345
      %p347 = pneg %p346
      // Predicated region
      $region49: #{vote_layer_3dssd_forward.1} parent=5 // pred_check
        _
      $region50: #{vote_layer_3dssd_forward.1} parent=5 // pred_check_branch
        %349 = sbr.rel (%p346) target = $region52
      $region51: #{vote_layer_3dssd_forward.1} parent=5 // pred_region
        %s350 = ssub.s32 %s20, 1
        %s351 = smul.u32 4, %s30
        %p352 = scmp.lt.s32.totalorder %s29, 1
        %s353 = scalar_select %p352, %s29, 1
        %p354 = scmp.lt.s32.totalorder %s351, 3
        %s355 = scalar_select %p354, %s351, 3
        %s356 = smul.addr %s353, 16
        %s357 = sadd.s32 %s355, %s356
        %s358 = smul.addr %s357, 8
        %s359 = scalar_lea.vmem %s0, %s358
        %p360 = pneg %p60
        %p361 = pneg %p57
        %p362 = pneg %p81
        %p363 = pneg %p78
        %p364 = pneg %p102
        %p365 = pneg %p99
        %p366 = pneg %p123
        %p367 = pneg %p120
        %p368 = pneg %p144
        %p369 = pneg %p141
        %p370 = pneg %p165
        %p371 = pneg %p162
        %p372 = pneg %p186
        %p373 = pneg %p183
        %p374 = pneg %p207
        %p375 = pneg %p204
        %p376 = pneg %p235
        %p377 = pneg %p232
        %s378 = sand.u32 %s222, 1
        %s379 = scalar_lea.sflag [#allocation3], %s378
        %s380 = sand.u32 %s222, 1
        %s381 = smul.addr %s380, 128
        %s382 = scalar_lea.vmem [#allocation2], %s381
        %p383 = pneg %p263
        %p384 = pneg %p260
        %s385 = smul.u32 4, %s30
        %p386 = scmp.lt.s32.totalorder %s29, 1
        %s387 = scalar_select %p386, %s29, 1
        %p388 = scmp.lt.s32.totalorder %s385, 3
        %s389 = scalar_select %p388, %s385, 3
        %s390 = smul.addr %s387, 4
        %s391 = sadd.s32 %s389, %s390
        %s392 = smul.addr %s391, 4
        %s393 = scalar_lea.vmem %s9, %s392
        %p394 = pneg %p291
        %p395 = pneg %p288
        %s396 = smul.u32 4, %s30
        %p397 = scmp.lt.s32.totalorder %s29, 1
        %s398 = scalar_select %p397, %s29, 1
        %p399 = scmp.lt.s32.totalorder %s396, 3
        %s400 = scalar_select %p399, %s396, 3
        %s401 = smul.addr %s398, 4
        %s402 = sadd.s32 %s400, %s401
        %s403 = smul.addr %s402, 4
        %s404 = scalar_lea.vmem %s10, %s403
        %s405 = smul.u32 4, %s30
        %p406 = scmp.lt.s32.totalorder %s29, 1
        %s407 = scalar_select %p406, %s29, 1
        %p408 = scmp.lt.s32.totalorder %s405, 3
        %s409 = scalar_select %p408, %s405, 3
        %s410 = smul.addr %s407, 16
        %s411 = sadd.s32 %s409, %s410
        %s412 = smul.addr %s411, 8
        %s413 = scalar_lea.vmem %s0, %s412
        %s414 = smul.u32 4, %s30
        %s415 = smul.u32 4, %s30
        %s416 = smul.u32 4, %s30
        %p417 = scmp.lt.s32.totalorder %s29, 1
        %s418 = scalar_select %p417, %s29, 1
        %p419 = scmp.lt.s32.totalorder %s416, 3
        %s420 = scalar_select %p419, %s416, 3
        %s421 = smul.addr %s418, 4
        %s422 = sadd.s32 %s420, %s421
        %s423 = smul.addr %s422, 4
        %s424 = scalar_lea.vmem %s9, %s423
        %s425 = smul.u32 4, %s30
        %s426 = smul.u32 4, %s30
        %p427 = scmp.lt.s32.totalorder %s29, 1
        %s428 = scalar_select %p427, %s29, 1
        %p429 = scmp.lt.s32.totalorder %s426, 3
        %s430 = scalar_select %p429, %s426, 3
        %s431 = smul.addr %s428, 4
        %s432 = sadd.s32 %s430, %s431
        %s433 = smul.addr %s432, 4
        %s434 = scalar_lea.vmem %s10, %s433
        %s435 = smul.u32 4, %s30
        %v437 = vld [vmem:[%s413] sm:$0xff]
        %v438 = vld [vmem:[%s413 + $0x8] sm:$0xff]
        %v439 = vld [vmem:[%s413 + $0x10] sm:$0xff]
        %v440 = vld [vmem:[%s413 + $0x18] sm:$0xff]
        %v441 = vld [vmem:[%s413 + $0x20] sm:$0xff]
        %v442 = vld [vmem:[%s413 + $0x28] sm:$0xff]
        %v443 = vld [vmem:[%s413 + $0x30] sm:$0xff]
        %v444 = vld [vmem:[%s413 + $0x38] sm:$0xff]
        %v445 = vld [vmem:[%s413 + $0x40] sm:$0xff]
        %v446 = vld [vmem:[%s413 + $0x48] sm:$0xff]
        %v447 = vld [vmem:[%s413 + $0x50] sm:$0xff]
        %v448 = vld [vmem:[%s413 + $0x58] sm:$0xff]
        %v449 = vld [vmem:[%s413 + $0x60] sm:$0xff]
        %v450 = vld [vmem:[%s413 + $0x68] sm:$0xff]
        %v451 = vld [vmem:[%s413 + $0x70] sm:$0xff]
        %v452 = vld [vmem:[%s413 + $0x78] sm:$0xff]
        %v453 = vpack.c.bf16 %v441, %v437
        %v454 = vpack.c.bf16 %v442, %v438
        %v455 = vpack.c.bf16 %v443, %v439
        %v456 = vpack.c.bf16 %v444, %v440
        %v457 = vpack.c.bf16 %v449, %v445
        %v458 = vpack.c.bf16 %v450, %v446
        %v459 = vpack.c.bf16 %v451, %v447
        %v460 = vpack.c.bf16 %v452, %v448
        %v461 = vld [vmem:[%s1] sm:$0xf]
        %v462 = vld [vmem:[%s1 + $0x4] sm:$0xf]
        %v463 = vld [vmem:[%s1 + $0x8] sm:$0xf]
        %v464 = vld [vmem:[%s1 + $0xc] sm:$0xf]
        %v465 = vld [vmem:[%s2] sm:$0xff]
        %v466 = vld [vmem:[%s2 + $0x8] sm:$0xff]
        %v467 = vld [vmem:[%s2 + $0x10] sm:$0xff]
        %v468 = vld [vmem:[%s2 + $0x18] sm:$0xff]
        %470 = vset.pattern.permute.xlu0 0
        %471 = vperm.xlu0 %470, %v465
        %v472 = vpop.permute.xlu0 %471
        %475 = vset.pattern.permute.xlu0 0
        %476 = vperm.xlu0 %475, %v466
        %v477 = vpop.permute.xlu0 %476
        %480 = vset.pattern.permute.xlu0 0
        %481 = vperm.xlu0 %480, %v467
        %v482 = vpop.permute.xlu0 %481
        %485 = vset.pattern.permute.xlu0 0
        %486 = vperm.xlu0 %485, %v468
        %v487 = vpop.permute.xlu0 %486
        %v493 = vunpack.c.l.b16 %v461
        %v494 = vunpack.c.l.b16 %v462
        %v495 = vunpack.c.l.b16 %v463
        %v496 = vunpack.c.l.b16 %v464
        %v497 = vpack.c.b16 %v494, %v493
        %v498 = vpack.c.b16 %v496, %v495
        %vm499 = vcmask 261120
        %v501 = vsel %vm499, %v497, 0
        %v504 = vsel %vm499, %v498, 0
        %506 = vmatprep.subr.bf16.mxu0 %v454
        %507 = vmatpush1.bf16.msra.mxu0 %v453
        %508 = vmatprep.subr.bf16.mxu0 %v458
        %509 = vmatpush1.bf16.msra.mxu0 %v457
        %510 = vmatprep.subr.bf16.mxu0 0
        %511 = vmatpush1.bf16.msra.mxu0 0
        %512 = vmatprep.subr.bf16.mxu0 0
        %513 = vmatpush1.bf16.msra.mxu0 0
        %514 = vmatprep.subr.bf16.mxu0 0
        %515 = vmatpush1.bf16.msra.mxu0 0
        %516 = vmatprep.subr.bf16.mxu0 0
        %517 = vmatpush1.bf16.msra.mxu0 0
        %518 = vmatprep.subr.bf16.mxu0 0
        %519 = vmatpush1.bf16.msra.mxu0 0
        %520 = vmatprep.subr.bf16.mxu0 0
        %521 = vmatpush1.bf16.msra.mxu0 0
        %522 = vmatprep.subr.bf16.mxu0 0
        %523 = vmatpush1.bf16.msra.mxu0 0
        %524 = vmatprep.subr.bf16.mxu0 0
        %525 = vmatpush1.bf16.msra.mxu0 0
        %526 = vmatprep.subr.bf16.mxu0 0
        %527 = vmatpush1.bf16.msra.mxu0 0
        %528 = vmatprep.subr.bf16.mxu0 0
        %529 = vmatpush1.bf16.msra.mxu0 0
        %530 = vmatprep.subr.bf16.mxu0 0
        %531 = vmatpush1.bf16.msra.mxu0 0
        %532 = vmatprep.subr.bf16.mxu0 0
        %533 = vmatpush1.bf16.msra.mxu0 0
        %534 = vmatprep.subr.bf16.mxu0 0
        %535 = vmatpush1.bf16.msra.mxu0 0
        %536 = vmatprep.subr.bf16.mxu0 0
        %537 = vmatpush1.bf16.msra.mxu0 0
        %538 = vmatprep.mubr.bf16.mxu0 0
        %539 = vmatmul.mubr.bf16.gmra.mrb[0].mxu0 %v501
        %v540 = vpop.f32.mrb[0].mxu0
        %v541 = vadd.f32 %v472, %v540
        %v542 = vpop.f32.mrb[0].mxu0
        %v543 = vadd.f32 %v472, %v542
        %v544 = vpop.f32.mrb[0].mxu0
        %v545 = vadd.f32 %v477, %v544
        %v546 = vpop.f32.mrb[0].mxu0
        %v547 = vadd.f32 %v477, %v546
        %548 = vmatprep.mubr.bf16.mxu0 0
        %549 = vmatmul.mubr.bf16.gmra.mrb[0].mxu0 %v504
        %v550 = vpop.f32.mrb[0].mxu0
        %v551 = vadd.f32 %v482, %v550
        %v552 = vpop.f32.mrb[0].mxu0
        %v553 = vadd.f32 %v482, %v552
        %v554 = vpop.f32.mrb[0].mxu0
        %v555 = vadd.f32 %v487, %v554
        %v556 = vpop.f32.mrb[0].mxu0
        %v557 = vadd.f32 %v487, %v556
        %558 = vdwg.mxu0
        %559 = vmatprep.subr.bf16.mxu0 %v456
        %560 = vmatpush1.bf16.msra.mxu0 %v455
        %561 = vmatprep.subr.bf16.mxu0 %v460
        %562 = vmatpush1.bf16.msra.mxu0 %v459
        %563 = vmatprep.subr.bf16.mxu0 0
        %564 = vmatpush1.bf16.msra.mxu0 0
        %565 = vmatprep.subr.bf16.mxu0 0
        %566 = vmatpush1.bf16.msra.mxu0 0
        %567 = vmatprep.subr.bf16.mxu0 0
        %568 = vmatpush1.bf16.msra.mxu0 0
        %569 = vmatprep.subr.bf16.mxu0 0
        %570 = vmatpush1.bf16.msra.mxu0 0
        %571 = vmatprep.subr.bf16.mxu0 0
        %572 = vmatpush1.bf16.msra.mxu0 0
        %573 = vmatprep.subr.bf16.mxu0 0
        %574 = vmatpush1.bf16.msra.mxu0 0
        %575 = vmatprep.subr.bf16.mxu0 0
        %576 = vmatpush1.bf16.msra.mxu0 0
        %577 = vmatprep.subr.bf16.mxu0 0
        %578 = vmatpush1.bf16.msra.mxu0 0
        %579 = vmatprep.subr.bf16.mxu0 0
        %580 = vmatpush1.bf16.msra.mxu0 0
        %581 = vmatprep.subr.bf16.mxu0 0
        %582 = vmatpush1.bf16.msra.mxu0 0
        %583 = vmatprep.subr.bf16.mxu0 0
        %584 = vmatpush1.bf16.msra.mxu0 0
        %585 = vmatprep.subr.bf16.mxu0 0
        %586 = vmatpush1.bf16.msra.mxu0 0
        %587 = vmatprep.subr.bf16.mxu0 0
        %588 = vmatpush1.bf16.msra.mxu0 0
        %589 = vmatprep.subr.bf16.mxu0 0
        %590 = vmatpush1.bf16.msra.mxu0 0
        %591 = vmatprep.mubr.bf16.mxu0 0
        %592 = vmatmul.mubr.bf16.gmra.mrb[0].mxu0 %v501
        %v593 = vpop.f32.mrb[0].mxu0
        %v594 = vadd.f32 %v472, %v593
        %v595 = vpop.f32.mrb[0].mxu0
        %v596 = vadd.f32 %v472, %v595
        %v597 = vpop.f32.mrb[0].mxu0
        %v598 = vadd.f32 %v477, %v597
        %v599 = vpop.f32.mrb[0].mxu0
        %v600 = vadd.f32 %v477, %v599
        %601 = vmatprep.mubr.bf16.mxu0 0
        %602 = vmatmul.mubr.bf16.gmra.mrb[0].mxu0 %v504
        %v603 = vpop.f32.mrb[0].mxu0
        %v604 = vadd.f32 %v482, %v603
        %v605 = vpop.f32.mrb[0].mxu0
        %v606 = vadd.f32 %v482, %v605
        %v607 = vpop.f32.mrb[0].mxu0
        %v608 = vadd.f32 %v487, %v607
        %v609 = vpop.f32.mrb[0].mxu0
        %v610 = vadd.f32 %v487, %v609
        %611 = vdwg.mxu0
        %v612 = vmax.f32 %v541, 0.0
        %v613 = vmax.f32 %v543, 0.0
        %v614 = vmax.f32 %v594, 0.0
        %v615 = vmax.f32 %v596, 0.0
        %v616 = vmax.f32 %v545, 0.0
        %v617 = vmax.f32 %v547, 0.0
        %v618 = vmax.f32 %v598, 0.0
        %v619 = vmax.f32 %v600, 0.0
        %v620 = vmax.f32 %v551, 0.0
        %v621 = vmax.f32 %v553, 0.0
        %v622 = vmax.f32 %v604, 0.0
        %v623 = vmax.f32 %v606, 0.0
        %v624 = vmax.f32 %v555, 0.0
        %v625 = vmax.f32 %v557, 0.0
        %v626 = vmax.f32 %v608, 0.0
        %v627 = vmax.f32 %v610, 0.0
        %v628 = vpack.c.bf16 %v616, %v612
        %v629 = vpack.c.bf16 %v617, %v613
        %v630 = vpack.c.bf16 %v618, %v614
        %v631 = vpack.c.bf16 %v619, %v615
        %v632 = vpack.c.bf16 %v624, %v620
        %v633 = vpack.c.bf16 %v625, %v621
        %v634 = vpack.c.bf16 %v626, %v622
        %v635 = vpack.c.bf16 %v627, %v623
        %v636 = vld [vmem:[%s3] sm:$0xf]
        %v637 = vld [vmem:[%s3 + $0x4] sm:$0xf]
        %v638 = vld [vmem:[%s3 + $0x8] sm:$0xf]
        %v639 = vld [vmem:[%s3 + $0xc] sm:$0xf]
        %v640 = vld [vmem:[%s3 + $0x10] sm:$0xf]
        %v641 = vld [vmem:[%s3 + $0x14] sm:$0xf]
        %v642 = vld [vmem:[%s3 + $0x18] sm:$0xf]
        %v643 = vld [vmem:[%s3 + $0x1c] sm:$0xf]
        %v644 = vld [vmem:[%s4] sm:$0xff]
        %v645 = vld [vmem:[%s4 + $0x8] sm:$0xff]
        %v646 = vld [vmem:[%s4 + $0x10] sm:$0xff]
        %v647 = vld [vmem:[%s4 + $0x18] sm:$0xff]
        %v648 = vld [vmem:[%s4 + $0x20] sm:$0xff]
        %v649 = vld [vmem:[%s4 + $0x28] sm:$0xff]
        %v650 = vld [vmem:[%s4 + $0x30] sm:$0xff]
        %v651 = vld [vmem:[%s4 + $0x38] sm:$0xff]
        %653 = vset.pattern.permute.xlu0 0
        %654 = vperm.xlu0 %653, %v644
        %v655 = vpop.permute.xlu0 %654
        %658 = vset.pattern.permute.xlu0 0
        %659 = vperm.xlu0 %658, %v645
        %v660 = vpop.permute.xlu0 %659
        %663 = vset.pattern.permute.xlu0 0
        %664 = vperm.xlu0 %663, %v646
        %v665 = vpop.permute.xlu0 %664
        %668 = vset.pattern.permute.xlu0 0
        %669 = vperm.xlu0 %668, %v647
        %v670 = vpop.permute.xlu0 %669
        %673 = vset.pattern.permute.xlu0 0
        %674 = vperm.xlu0 %673, %v648
        %v675 = vpop.permute.xlu0 %674
        %678 = vset.pattern.permute.xlu0 0
        %679 = vperm.xlu0 %678, %v649
        %v680 = vpop.permute.xlu0 %679
        %683 = vset.pattern.permute.xlu0 0
        %684 = vperm.xlu0 %683, %v650
        %v685 = vpop.permute.xlu0 %684
        %688 = vset.pattern.permute.xlu0 0
        %689 = vperm.xlu0 %688, %v651
        %v690 = vpop.permute.xlu0 %689
        %v700 = vunpack.c.l.b16 %v636
        %v701 = vunpack.c.l.b16 %v637
        %v702 = vunpack.c.l.b16 %v638
        %v703 = vunpack.c.l.b16 %v639
        %v704 = vunpack.c.l.b16 %v640
        %v705 = vunpack.c.l.b16 %v641
        %v706 = vunpack.c.l.b16 %v642
        %v707 = vunpack.c.l.b16 %v643
        %v708 = vpack.c.b16 %v701, %v700
        %v709 = vpack.c.b16 %v703, %v702
        %v710 = vpack.c.b16 %v705, %v704
        %v711 = vpack.c.b16 %v707, %v706
        %v713 = vsel %vm499, %v708, 0
        %v716 = vsel %vm499, %v709, 0
        %v719 = vsel %vm499, %v710, 0
        %v722 = vsel %vm499, %v711, 0
        %724 = vmatprep.subr.bf16.mxu0 %v629
        %725 = vmatpush1.bf16.msra.mxu0 %v628
        %726 = vmatprep.subr.bf16.mxu0 %v633
        %727 = vmatpush1.bf16.msra.mxu0 %v632
        %728 = vmatprep.subr.bf16.mxu0 0
        %729 = vmatpush1.bf16.msra.mxu0 0
        %730 = vmatprep.subr.bf16.mxu0 0
        %731 = vmatpush1.bf16.msra.mxu0 0
        %732 = vmatprep.subr.bf16.mxu0 0
        %733 = vmatpush1.bf16.msra.mxu0 0
        %734 = vmatprep.subr.bf16.mxu0 0
        %735 = vmatpush1.bf16.msra.mxu0 0
        %736 = vmatprep.subr.bf16.mxu0 0
        %737 = vmatpush1.bf16.msra.mxu0 0
        %738 = vmatprep.subr.bf16.mxu0 0
        %739 = vmatpush1.bf16.msra.mxu0 0
        %740 = vmatprep.subr.bf16.mxu0 0
        %741 = vmatpush1.bf16.msra.mxu0 0
        %742 = vmatprep.subr.bf16.mxu0 0
        %743 = vmatpush1.bf16.msra.mxu0 0
        %744 = vmatprep.subr.bf16.mxu0 0
        %745 = vmatpush1.bf16.msra.mxu0 0
        %746 = vmatprep.subr.bf16.mxu0 0
        %747 = vmatpush1.bf16.msra.mxu0 0
        %748 = vmatprep.subr.bf16.mxu0 0
        %749 = vmatpush1.bf16.msra.mxu0 0
        %750 = vmatprep.subr.bf16.mxu0 0
        %751 = vmatpush1.bf16.msra.mxu0 0
        %752 = vmatprep.subr.bf16.mxu0 0
        %753 = vmatpush1.bf16.msra.mxu0 0
        %754 = vmatprep.subr.bf16.mxu0 0
        %755 = vmatpush1.bf16.msra.mxu0 0
        %756 = vmatprep.mubr.bf16.mxu0 0
        %757 = vmatmul.mubr.bf16.gmra.mrb[0].mxu0 %v713
        %v758 = vpop.f32.mrb[0].mxu0
        %v759 = vadd.f32 %v655, %v758
        %v760 = vpop.f32.mrb[0].mxu0
        %v761 = vadd.f32 %v655, %v760
        %v762 = vpop.f32.mrb[0].mxu0
        %v763 = vadd.f32 %v660, %v762
        %v764 = vpop.f32.mrb[0].mxu0
        %v765 = vadd.f32 %v660, %v764
        %766 = vmatprep.mubr.bf16.mxu0 0
        %767 = vmatmul.mubr.bf16.gmra.mrb[0].mxu0 %v716
        %v768 = vpop.f32.mrb[0].mxu0
        %v769 = vadd.f32 %v665, %v768
        %v770 = vpop.f32.mrb[0].mxu0
        %v771 = vadd.f32 %v665, %v770
        %v772 = vpop.f32.mrb[0].mxu0
        %v773 = vadd.f32 %v670, %v772
        %v774 = vpop.f32.mrb[0].mxu0
        %v775 = vadd.f32 %v670, %v774
        %776 = vmatprep.mubr.bf16.mxu0 0
        %777 = vmatmul.mubr.bf16.gmra.mrb[0].mxu0 %v719
        %v778 = vpop.f32.mrb[0].mxu0
        %v779 = vadd.f32 %v675, %v778
        %v780 = vpop.f32.mrb[0].mxu0
        %v781 = vadd.f32 %v675, %v780
        %v782 = vpop.f32.mrb[0].mxu0
        %v783 = vadd.f32 %v680, %v782
        %v784 = vpop.f32.mrb[0].mxu0
        %v785 = vadd.f32 %v680, %v784
        %786 = vmatprep.mubr.bf16.mxu0 0
        %787 = vmatmul.mubr.bf16.gmra.mrb[0].mxu0 %v722
        %v788 = vpop.f32.mrb[0].mxu0
        %v789 = vadd.f32 %v685, %v788
        %v790 = vpop.f32.mrb[0].mxu0
        %v791 = vadd.f32 %v685, %v790
        %v792 = vpop.f32.mrb[0].mxu0
        %v793 = vadd.f32 %v690, %v792
        %v794 = vpop.f32.mrb[0].mxu0
        %v795 = vadd.f32 %v690, %v794
        %796 = vdwg.mxu0
        %797 = vmatprep.subr.bf16.mxu0 %v631
        %798 = vmatpush1.bf16.msra.mxu0 %v630
        %799 = vmatprep.subr.bf16.mxu0 %v635
        %800 = vmatpush1.bf16.msra.mxu0 %v634
        %801 = vmatprep.subr.bf16.mxu0 0
        %802 = vmatpush1.bf16.msra.mxu0 0
        %803 = vmatprep.subr.bf16.mxu0 0
        %804 = vmatpush1.bf16.msra.mxu0 0
        %805 = vmatprep.subr.bf16.mxu0 0
        %806 = vmatpush1.bf16.msra.mxu0 0
        %807 = vmatprep.subr.bf16.mxu0 0
        %808 = vmatpush1.bf16.msra.mxu0 0
        %809 = vmatprep.subr.bf16.mxu0 0
        %810 = vmatpush1.bf16.msra.mxu0 0
        %811 = vmatprep.subr.bf16.mxu0 0
        %812 = vmatpush1.bf16.msra.mxu0 0
        %813 = vmatprep.subr.bf16.mxu0 0
        %814 = vmatpush1.bf16.msra.mxu0 0
        %815 = vmatprep.subr.bf16.mxu0 0
        %816 = vmatpush1.bf16.msra.mxu0 0
        %817 = vmatprep.subr.bf16.mxu0 0
        %818 = vmatpush1.bf16.msra.mxu0 0
        %819 = vmatprep.subr.bf16.mxu0 0
        %820 = vmatpush1.bf16.msra.mxu0 0
        %821 = vmatprep.subr.bf16.mxu0 0
        %822 = vmatpush1.bf16.msra.mxu0 0
        %823 = vmatprep.subr.bf16.mxu0 0
        %824 = vmatpush1.bf16.msra.mxu0 0
        %825 = vmatprep.subr.bf16.mxu0 0
        %826 = vmatpush1.bf16.msra.mxu0 0
        %827 = vmatprep.subr.bf16.mxu0 0
        %828 = vmatpush1.bf16.msra.mxu0 0
        %829 = vmatprep.mubr.bf16.mxu0 0
        %830 = vmatmul.mubr.bf16.gmra.mrb[0].mxu0 %v713
        %v831 = vpop.f32.mrb[0].mxu0
        %v832 = vadd.f32 %v655, %v831
        %v833 = vpop.f32.mrb[0].mxu0
        %v834 = vadd.f32 %v655, %v833
        %v835 = vpop.f32.mrb[0].mxu0
        %v836 = vadd.f32 %v660, %v835
        %v837 = vpop.f32.mrb[0].mxu0
        %v838 = vadd.f32 %v660, %v837
        %839 = vmatprep.mubr.bf16.mxu0 0
        %840 = vmatmul.mubr.bf16.gmra.mrb[0].mxu0 %v716
        %v841 = vpop.f32.mrb[0].mxu0
        %v842 = vadd.f32 %v665, %v841
        %v843 = vpop.f32.mrb[0].mxu0
        %v844 = vadd.f32 %v665, %v843
        %v845 = vpop.f32.mrb[0].mxu0
        %v846 = vadd.f32 %v670, %v845
        %v847 = vpop.f32.mrb[0].mxu0
        %v848 = vadd.f32 %v670, %v847
        %849 = vmatprep.mubr.bf16.mxu0 0
        %850 = vmatmul.mubr.bf16.gmra.mrb[0].mxu0 %v719
        %v851 = vpop.f32.mrb[0].mxu0
        %v852 = vadd.f32 %v675, %v851
        %v853 = vpop.f32.mrb[0].mxu0
        %v854 = vadd.f32 %v675, %v853
        %v855 = vpop.f32.mrb[0].mxu0
        %v856 = vadd.f32 %v680, %v855
        %v857 = vpop.f32.mrb[0].mxu0
        %v858 = vadd.f32 %v680, %v857
        %859 = vmatprep.mubr.bf16.mxu0 0
        %860 = vmatmul.mubr.bf16.gmra.mrb[0].mxu0 %v722
        %v861 = vpop.f32.mrb[0].mxu0
        %v862 = vadd.f32 %v685, %v861
        %v863 = vpop.f32.mrb[0].mxu0
        %v864 = vadd.f32 %v685, %v863
        %v865 = vpop.f32.mrb[0].mxu0
        %v866 = vadd.f32 %v690, %v865
        %v867 = vpop.f32.mrb[0].mxu0
        %v868 = vadd.f32 %v690, %v867
        %869 = vdwg.mxu0
        %v870 = vmax.f32 %v759, 0.0
        %v871 = vmax.f32 %v761, 0.0
        %v872 = vmax.f32 %v832, 0.0
        %v873 = vmax.f32 %v834, 0.0
        %v874 = vmax.f32 %v763, 0.0
        %v875 = vmax.f32 %v765, 0.0
        %v876 = vmax.f32 %v836, 0.0
        %v877 = vmax.f32 %v838, 0.0
        %v878 = vmax.f32 %v769, 0.0
        %v879 = vmax.f32 %v771, 0.0
        %v880 = vmax.f32 %v842, 0.0
        %v881 = vmax.f32 %v844, 0.0
        %v882 = vmax.f32 %v773, 0.0
        %v883 = vmax.f32 %v775, 0.0
        %v884 = vmax.f32 %v846, 0.0
        %v885 = vmax.f32 %v848, 0.0
        %v886 = vmax.f32 %v779, 0.0
        %v887 = vmax.f32 %v781, 0.0
        %v888 = vmax.f32 %v852, 0.0
        %v889 = vmax.f32 %v854, 0.0
        %v890 = vmax.f32 %v783, 0.0
        %v891 = vmax.f32 %v785, 0.0
        %v892 = vmax.f32 %v856, 0.0
        %v893 = vmax.f32 %v858, 0.0
        %v894 = vmax.f32 %v789, 0.0
        %v895 = vmax.f32 %v791, 0.0
        %v896 = vmax.f32 %v862, 0.0
        %v897 = vmax.f32 %v864, 0.0
        %v898 = vmax.f32 %v793, 0.0
        %v899 = vmax.f32 %v795, 0.0
        %v900 = vmax.f32 %v866, 0.0
        %v901 = vmax.f32 %v868, 0.0
        %v902 = vpack.c.bf16 %v874, %v870
        %v903 = vpack.c.bf16 %v875, %v871
        %v904 = vpack.c.bf16 %v876, %v872
        %v905 = vpack.c.bf16 %v877, %v873
        %v906 = vpack.c.bf16 %v882, %v878
        %v907 = vpack.c.bf16 %v883, %v879
        %v908 = vpack.c.bf16 %v884, %v880
        %v909 = vpack.c.bf16 %v885, %v881
        %v910 = vpack.c.bf16 %v890, %v886
        %v911 = vpack.c.bf16 %v891, %v887
        %v912 = vpack.c.bf16 %v892, %v888
        %v913 = vpack.c.bf16 %v893, %v889
        %v914 = vpack.c.bf16 %v898, %v894
        %v915 = vpack.c.bf16 %v899, %v895
        %v916 = vpack.c.bf16 %v900, %v896
        %v917 = vpack.c.bf16 %v901, %v897
        %v918 = vld [vmem:[%s5] sm:$0x3]
        %v919 = vld [vmem:[%s6] sm:$0x7]
        %v920 = vld [vmem:[%s7] sm:$0x7]
        %922 = vset.pattern.permute.xlu0 0
        %923 = vperm.xlu0 %922, %v919
        %v924 = vpop.permute.xlu0 %923
        %vm926 = vcmask 523264
        %v928 = vsel %vm926, %v918, 0
        %930 = vmatprep.subr.bf16.mxu0 %v903
        %931 = vmatpush1.bf16.msra.mxu0 %v902
        %932 = vmatprep.subr.bf16.mxu0 %v907
        %933 = vmatpush1.bf16.msra.mxu0 %v906
        %934 = vmatprep.subr.bf16.mxu0 %v911
        %935 = vmatpush1.bf16.msra.mxu0 %v910
        %936 = vmatprep.subr.bf16.mxu0 %v915
        %937 = vmatpush1.bf16.msra.mxu0 %v914
        %938 = vmatprep.subr.bf16.mxu0 0
        %939 = vmatpush1.bf16.msra.mxu0 0
        %940 = vmatprep.subr.bf16.mxu0 0
        %941 = vmatpush1.bf16.msra.mxu0 0
        %942 = vmatprep.subr.bf16.mxu0 0
        %943 = vmatpush1.bf16.msra.mxu0 0
        %944 = vmatprep.subr.bf16.mxu0 0
        %945 = vmatpush1.bf16.msra.mxu0 0
        %946 = vmatprep.subr.bf16.mxu0 0
        %947 = vmatpush1.bf16.msra.mxu0 0
        %948 = vmatprep.subr.bf16.mxu0 0
        %949 = vmatpush1.bf16.msra.mxu0 0
        %950 = vmatprep.subr.bf16.mxu0 0
        %951 = vmatpush1.bf16.msra.mxu0 0
        %952 = vmatprep.subr.bf16.mxu0 0
        %953 = vmatpush1.bf16.msra.mxu0 0
        %954 = vmatprep.subr.bf16.mxu0 0
        %955 = vmatpush1.bf16.msra.mxu0 0
        %956 = vmatprep.subr.bf16.mxu0 0
        %957 = vmatpush1.bf16.msra.mxu0 0
        %958 = vmatprep.subr.bf16.mxu0 0
        %959 = vmatpush1.bf16.msra.mxu0 0
        %960 = vmatprep.subr.bf16.mxu0 0
        %961 = vmatpush1.bf16.msra.mxu0 0
        %962 = vmatprep.mubr.bf16.mxu0 0
        %963 = vmatmul.mubr.bf16.gmra.mrb[0].mxu0 %v928
        %v964 = vpop.f32.mrb[0].mxu0
        %v965 = vadd.f32 %v924, %v964
        %v966 = vpop.f32.mrb[0].mxu0
        %v967 = vadd.f32 %v924, %v966
        %v968 = vpop.f32.mrb[0].mxu0
        %v969 = vpop.f32.mrb[0].mxu0
        %970 = vdwg.mxu0
        %971 = vmatprep.subr.bf16.mxu0 %v905
        %972 = vmatpush1.bf16.msra.mxu0 %v904
        %973 = vmatprep.subr.bf16.mxu0 %v909
        %974 = vmatpush1.bf16.msra.mxu0 %v908
        %975 = vmatprep.subr.bf16.mxu0 %v913
        %976 = vmatpush1.bf16.msra.mxu0 %v912
        %977 = vmatprep.subr.bf16.mxu0 %v917
        %978 = vmatpush1.bf16.msra.mxu0 %v916
        %979 = vmatprep.subr.bf16.mxu0 0
        %980 = vmatpush1.bf16.msra.mxu0 0
        %981 = vmatprep.subr.bf16.mxu0 0
        %982 = vmatpush1.bf16.msra.mxu0 0
        %983 = vmatprep.subr.bf16.mxu0 0
        %984 = vmatpush1.bf16.msra.mxu0 0
        %985 = vmatprep.subr.bf16.mxu0 0
        %986 = vmatpush1.bf16.msra.mxu0 0
        %987 = vmatprep.subr.bf16.mxu0 0
        %988 = vmatpush1.bf16.msra.mxu0 0
        %989 = vmatprep.subr.bf16.mxu0 0
        %990 = vmatpush1.bf16.msra.mxu0 0
        %991 = vmatprep.subr.bf16.mxu0 0
        %992 = vmatpush1.bf16.msra.mxu0 0
        %993 = vmatprep.subr.bf16.mxu0 0
        %994 = vmatpush1.bf16.msra.mxu0 0
        %995 = vmatprep.subr.bf16.mxu0 0
        %996 = vmatpush1.bf16.msra.mxu0 0
        %997 = vmatprep.subr.bf16.mxu0 0
        %998 = vmatpush1.bf16.msra.mxu0 0
        %999 = vmatprep.subr.bf16.mxu0 0
        %1000 = vmatpush1.bf16.msra.mxu0 0
        %1001 = vmatprep.subr.bf16.mxu0 0
        %1002 = vmatpush1.bf16.msra.mxu0 0
        %1003 = vmatprep.mubr.bf16.mxu0 0
        %1004 = vmatmul.mubr.bf16.gmra.mrb[0].mxu0 %v928
        %v1005 = vpop.f32.mrb[0].mxu0
        %v1006 = vadd.f32 %v924, %v1005
        %v1007 = vpop.f32.mrb[0].mxu0
        %v1008 = vadd.f32 %v924, %v1007
        %v1009 = vpop.f32.mrb[0].mxu0
        %v1010 = vpop.f32.mrb[0].mxu0
        %1011 = vdwg.mxu0
        %v1012 = vsub.f32 0.0, %v920
        %1014 = vset.pattern.permute.xlu0 0
        %1015 = vperm.xlu0 %1014, %v920
        %v1016 = vpop.permute.xlu0 %1015
        %vm1018 = vcmp.lt.f32.partialorder %v965, %v1016
        %vm1019 = vcmp.lt.f32.partialorder %v967, %v1016
        %vm1020 = vcmp.lt.f32.partialorder %v1006, %v1016
        %vm1021 = vcmp.lt.f32.partialorder %v1008, %v1016
        %v1022 = vsel %vm1018, %v1016, %v965
        %v1023 = vsel %vm1019, %v1016, %v967
        %v1024 = vsel %vm1020, %v1016, %v1006
        %v1025 = vsel %vm1021, %v1016, %v1008
        %1027 = vset.pattern.permute.xlu0 0
        %1028 = vperm.xlu0 %1027, %v1012
        %v1029 = vpop.permute.xlu0 %1028
        %vm1031 = vcmp.gt.f32.partialorder %v1022, %v1029
        %vm1032 = vcmp.gt.f32.partialorder %v1023, %v1029
        %vm1033 = vcmp.gt.f32.partialorder %v1024, %v1029
        %vm1034 = vcmp.gt.f32.partialorder %v1025, %v1029
        %v1035 = vsel %vm1031, %v1029, %v1022
        %v1036 = vsel %vm1032, %v1029, %v1023
        %v1037 = vsel %vm1033, %v1029, %v1024
        %v1038 = vsel %vm1034, %v1029, %v1025
        %v1055 = vunpack.c.l.b16 %v902
        %v1056 = vunpack.c.l.b16 %v903
        %v1057 = vunpack.c.l.b16 %v904
        %v1058 = vunpack.c.l.b16 %v905
        %v1059 = vunpack.c.h.b16 %v902
        %v1060 = vunpack.c.h.b16 %v903
        %v1061 = vunpack.c.h.b16 %v904
        %v1062 = vunpack.c.h.b16 %v905
        %v1063 = vunpack.c.l.b16 %v906
        %v1064 = vunpack.c.l.b16 %v907
        %v1065 = vunpack.c.l.b16 %v908
        %v1066 = vunpack.c.l.b16 %v909
        %v1067 = vunpack.c.h.b16 %v906
        %v1068 = vunpack.c.h.b16 %v907
        %v1069 = vunpack.c.h.b16 %v908
        %v1070 = vunpack.c.h.b16 %v909
        %v1071 = vunpack.c.l.b16 %v910
        %v1072 = vunpack.c.l.b16 %v911
        %v1073 = vunpack.c.l.b16 %v912
        %v1074 = vunpack.c.l.b16 %v913
        %v1075 = vunpack.c.h.b16 %v910
        %v1076 = vunpack.c.h.b16 %v911
        %v1077 = vunpack.c.h.b16 %v912
        %v1078 = vunpack.c.h.b16 %v913
        %v1079 = vunpack.c.l.b16 %v914
        %v1080 = vunpack.c.l.b16 %v915
        %v1081 = vunpack.c.l.b16 %v916
        %v1082 = vunpack.c.l.b16 %v917
        %v1083 = vunpack.c.h.b16 %v914
        %v1084 = vunpack.c.h.b16 %v915
        %v1085 = vunpack.c.h.b16 %v916
        %v1086 = vunpack.c.h.b16 %v917
        %v1087 = vpack.c.b16 %v1056, %v1055
        %v1088 = vpack.c.b16 %v1058, %v1057
        %v1089 = vpack.c.b16 %v1060, %v1059
        %v1090 = vpack.c.b16 %v1062, %v1061
        %v1091 = vpack.c.b16 %v1064, %v1063
        %v1092 = vpack.c.b16 %v1066, %v1065
        %v1093 = vpack.c.b16 %v1068, %v1067
        %v1094 = vpack.c.b16 %v1070, %v1069
        %v1095 = vpack.c.b16 %v1072, %v1071
        %v1096 = vpack.c.b16 %v1074, %v1073
        %v1097 = vpack.c.b16 %v1076, %v1075
        %v1098 = vpack.c.b16 %v1078, %v1077
        %v1099 = vpack.c.b16 %v1080, %v1079
        %v1100 = vpack.c.b16 %v1082, %v1081
        %v1101 = vpack.c.b16 %v1084, %v1083
        %v1102 = vpack.c.b16 %v1086, %v1085
        %1119 = vst [vmem:[%s382] sm:$0xff] %v1087
        %1120 = vst [vmem:[%s382 + $0x8] sm:$0xff] %v1088
        %1121 = vst [vmem:[%s382 + $0x10] sm:$0xff] %v1089
        %1122 = vst [vmem:[%s382 + $0x18] sm:$0xff] %v1090
        %1123 = vst [vmem:[%s382 + $0x20] sm:$0xff] %v1091
        %1124 = vst [vmem:[%s382 + $0x28] sm:$0xff] %v1092
        %1125 = vst [vmem:[%s382 + $0x30] sm:$0xff] %v1093
        %1126 = vst [vmem:[%s382 + $0x38] sm:$0xff] %v1094
        %1127 = vst [vmem:[%s382 + $0x40] sm:$0xff] %v1095
        %1128 = vst [vmem:[%s382 + $0x48] sm:$0xff] %v1096
        %1129 = vst [vmem:[%s382 + $0x50] sm:$0xff] %v1097
        %1130 = vst [vmem:[%s382 + $0x58] sm:$0xff] %v1098
        %1131 = vst [vmem:[%s382 + $0x60] sm:$0xff] %v1099
        %1132 = vst [vmem:[%s382 + $0x68] sm:$0xff] %v1100
        %1133 = vst [vmem:[%s382 + $0x70] sm:$0xff] %v1101
        %1134 = vst [vmem:[%s382 + $0x78] sm:$0xff] %v1102
        %v1139 = vcombine.low %v1035, %v1036
        %v1140 = vcombine.low %v1037, %v1038
        %1143 = vst [vmem:[%s424] sm:$0x77] %v1139
        %1144 = vst [vmem:[%s424 + $0x8] sm:$0x77] %v1140
        %v1149 = vcombine.low %v965, %v967
        %v1150 = vcombine.low %v1006, %v1008
        %1153 = vst [vmem:[%s434] sm:$0x77] %v1149
        %1154 = vst [vmem:[%s434 + $0x8] sm:$0x77] %v1150
        %s1155 = sand.u32 %s222, 1
        %s1156 = scalar_lea.sflag [#allocation3], %s1155
        %s1157 = sand.u32 %s222, 1
        %s1158 = smul.addr %s1157, 128
        %s1159 = scalar_lea.vmem [#allocation2], %s1158
        %s1160 = smul.u32 4, %s30
        %p1161 = scmp.lt.s32.totalorder %s29, 1
        %s1162 = scalar_select %p1161, %s29, 1
        %p1163 = scmp.lt.s32.totalorder %s1160, 3
        %s1164 = scalar_select %p1163, %s1160, 3
        %s1165 = smul.addr %s1162, 4
        %s1166 = sadd.s32 %s1164, %s1165
        %s1167 = smul.addr %s1166, 4
        %s1168 = scalar_lea.vmem %s9, %s1167
        %s1169 = smul.u32 4, %s30
        %p1170 = scmp.lt.s32.totalorder %s29, 1
        %s1171 = scalar_select %p1170, %s29, 1
        %p1172 = scmp.lt.s32.totalorder %s1169, 3
        %s1173 = scalar_select %p1172, %s1169, 3
        %s1174 = smul.addr %s1171, 4
        %s1175 = sadd.s32 %s1173, %s1174
        %s1176 = smul.addr %s1175, 4
        %s1177 = scalar_lea.vmem %s10, %s1176
        // Predicated region
        $region53: #{vote_layer_3dssd_forward.1} parent=51 // pred_check
          %p1178 = pneg %p232
        $region54: #{vote_layer_3dssd_forward.1} parent=51 // pred_check_branch
          %1180 = sbr.rel (%p1178) target = $region56
        $region55: #{vote_layer_3dssd_forward.1} parent=51 // pred_region
          %s1181 = smul.u32 4, %s30
          %s1183 = ssub.s32 2048, 2048
          %1184 = vsyncadd %s1156, %s1183
          %s1185 = smul.addr %s29, 32
          %s1186 = sadd.s32 %s1181, %s1185
          %s1187 = smul.addr %s1186, 64
          %s1188 = scalar_lea.hbm %s8, %s1187
          %s1189 = sshll.u32 %s1159, 4
          %s1190 = int_to_ptr.vmem [resolvable:$true] %s1189
          %1195 = dma.vmem_to_hbm [thread:$0]  %s1190, 2048, %s1188, %s1156, 256, 256, 16
        $region56: #{vote_layer_3dssd_forward.1} parent=51 // pred_fallthru
          _
        // Predicated region
        $region57: #{vote_layer_3dssd_forward.1} parent=51 // pred_check
          %p1196 = pneg %p260
        $region58: #{vote_layer_3dssd_forward.1} parent=51 // pred_check_branch
          %1198 = sbr.rel (%p1196) target = $region60
        $region59: #{vote_layer_3dssd_forward.1} parent=51 // pred_region
          %s1199 = smul.u32 4, %s30
        $region60: #{vote_layer_3dssd_forward.1} parent=51 // pred_fallthru
          _
        // Predicated region
        $region61: #{vote_layer_3dssd_forward.1} parent=51 // pred_check
          %p1200 = pneg %p288
        $region62: #{vote_layer_3dssd_forward.1} parent=51 // pred_check_branch
          %1202 = sbr.rel (%p1200) target = $region64
        $region63: #{vote_layer_3dssd_forward.1} parent=51 // pred_region
          %s1203 = smul.u32 4, %s30
        $region64: #{vote_layer_3dssd_forward.1} parent=51 // pred_fallthru
          _
      $region52: #{vote_layer_3dssd_forward.1} parent=5 // pred_fallthru
        _
      %p1204 = scmp.le.s32.totalorder 2, %s20
      // Predicated region
      $region65: #{vote_layer_3dssd_forward.1} parent=5 // pred_check
        %p1205 = pneg %p1204
      $region66: #{vote_layer_3dssd_forward.1} parent=5 // pred_check_branch
        %1207 = sbr.rel (%p1205) target = $region68
      $region67: #{vote_layer_3dssd_forward.1} parent=5 // pred_region
        %s1208 = ssub.s32 %s20, 2
        // Predicated region
        $region69: #{vote_layer_3dssd_forward.1} parent=67 // pred_check
          %p1209 = pneg %p238
        $region70: #{vote_layer_3dssd_forward.1} parent=67 // pred_check_branch
          %1211 = sbr.rel (%p1209) target = $region72
        $region71: #{vote_layer_3dssd_forward.1} parent=67 // pred_region
          %s1212 = sand.u32 %s223, 1
          %s1213 = scalar_lea.sflag [#allocation3], %s1212
          %s1214 = sand.u32 %s223, 1
          %s1215 = smul.addr %s1214, 128
          %s1216 = scalar_lea.vmem [#allocation2], %s1215
          %1217 = dma.done %s1213, 2048
        $region72: #{vote_layer_3dssd_forward.1} parent=67 // pred_fallthru
          _
        // Predicated region
        $region73: #{vote_layer_3dssd_forward.1} parent=67 // pred_check
          %p1218 = pneg %p266
        $region74: #{vote_layer_3dssd_forward.1} parent=67 // pred_check_branch
          %1220 = sbr.rel (%p1218) target = $region76
        $region75: #{vote_layer_3dssd_forward.1} parent=67 // pred_region
          %s1221 = smul.u32 4, %s32
          %p1222 = scmp.lt.s32.totalorder %s31, 1
          %s1223 = scalar_select %p1222, %s31, 1
          %p1224 = scmp.lt.s32.totalorder %s1221, 3
          %s1225 = scalar_select %p1224, %s1221, 3
          %s1226 = smul.addr %s1223, 4
          %s1227 = sadd.s32 %s1225, %s1226
          %s1228 = smul.addr %s1227, 4
          %s1229 = scalar_lea.vmem %s9, %s1228
        $region76: #{vote_layer_3dssd_forward.1} parent=67 // pred_fallthru
          _
        // Predicated region
        $region77: #{vote_layer_3dssd_forward.1} parent=67 // pred_check
          %p1230 = pneg %p294
        $region78: #{vote_layer_3dssd_forward.1} parent=67 // pred_check_branch
          %1232 = sbr.rel (%p1230) target = $region80
        $region79: #{vote_layer_3dssd_forward.1} parent=67 // pred_region
          %s1233 = smul.u32 4, %s32
          %p1234 = scmp.lt.s32.totalorder %s31, 1
          %s1235 = scalar_select %p1234, %s31, 1
          %p1236 = scmp.lt.s32.totalorder %s1233, 3
          %s1237 = scalar_select %p1236, %s1233, 3
          %s1238 = smul.addr %s1235, 4
          %s1239 = sadd.s32 %s1237, %s1238
          %s1240 = smul.addr %s1239, 4
          %s1241 = scalar_lea.vmem %s10, %s1240
        $region80: #{vote_layer_3dssd_forward.1} parent=67 // pred_fallthru
          _
      $region68: #{vote_layer_3dssd_forward.1} parent=5 // pred_fallthru
        _
    $region6: #{vote_layer_3dssd_forward.1} parent=1 // loop_footer
      %s24 = sadd.s32 1, %s20
    $region7: #{vote_layer_3dssd_forward.1} parent=1 // loop_footer_branch
      %19 = sbr.rel target = $region3
    $region8: #{vote_layer_3dssd_forward.1} parent=1 // loop_exit
      _
    %1242 = vsyncpa [#allocation3], 1
    %s1243 = scalar_lea.sflag [#allocation3], 1
    %1244 = vsyncpa %s1243, 1

</llo_original>
